<compile_context>
chip_gen: v7x
topology: tpu7x:2x2x1
jax: 0.10.0
libtpu: 0.0.40
codegen_flags: <defaults>
</compile_context>

<pallas_src>
import math

import jax
import jax.numpy as jnp
import numpy as np
from jax.experimental import pallas as pl
from jax.experimental.pallas import tpu as pltpu


def _positional_embedding_kernel(const_ref, o_ref):
    # const_ref: (2, D) f32 — row 0: per-lane angular frequency omega
    #            (even-lane frequency repeated onto the odd lane),
    #            row 1: per-lane phase (0 on even lanes, pi/2 on odd lanes).
    # o_ref:     (1, s_tile, D) output tile.
    _, s_tile, d_model = o_ref.shape
    s0 = pl.program_id(0) * s_tile                        # first position of tile

    consts = const_ref[...]                               # (2, D), resident in VMEM
    inv_freq = consts[0:1, :]                             # (1, D)
    phase = consts[1:2, :]                                # (1, D)

    # Per-row positions for this tile (exact in f32, positions < 2^24).
    pos = (jax.lax.broadcasted_iota(jnp.int32, (s_tile, d_model), 0)
           + s0).astype(jnp.float32)

    # Single transcendental per element: cos(x) == sin(x + pi/2).
    angle = pos * inv_freq + phase                        # VPU, broadcast (1,D)
    o_ref[0] = jnp.sin(angle).astype(o_ref.dtype)         # EUP + store


def _round_up(x, m):
    return (x + m - 1) // m * m


def positional_embedding(seq_len, embed_dim, *, dtype=jnp.float32,
                         max_seq_tile=2048):
    """Returns the (1, seq_len, embed_dim) sinusoidal positional-embedding table."""
    assert seq_len >= 1
    assert embed_dim % 2 == 0, "embed_dim must be even (as in the PyTorch module)"

    # ---- per-lane constants, computed once (hoisted out of the kernel body) ----
    # Matches the reference: div_term = exp(arange(0, D, 2) * (-ln(10000)/D)).
    half = jnp.exp(jnp.arange(0, embed_dim, 2, dtype=jnp.float32)
                   * jnp.float32(-math.log(10000.0) / embed_dim))
    inv_freq = jnp.repeat(half, 2)                                   # (D,)
    phase = jnp.tile(jnp.array([0.0, math.pi / 2.0], jnp.float32),
                     embed_dim // 2)                                 # (D,)
    consts = jnp.stack([inv_freq, phase], axis=0)                    # (2, D) f32

    # ---- choose the sequence tile ----
    bytes_per_row = embed_dim * jnp.dtype(dtype).itemsize
    # Keep the double-buffered output tile well inside VMEM on every generation
    # (v7x: 64 MiB per TensorCore) -> ~16 MiB per tile.
    vmem_rows_cap = max(8, ((16 * 1024 * 1024) // bytes_per_row) // 8 * 8)

    cap = min(max_seq_tile, vmem_rows_cap)
    if seq_len >= 16:
        # Ensure the "parallel" grid has at least 2 steps so both TensorCores
        # get work on megacore parts (v7x); harmless on single-core chips.
        cap = min(cap, _round_up(pl.cdiv(seq_len, 2), 8))

    if cap >= seq_len:
        s_tile = seq_len                 # full-dim block: any size is allowed
    else:
        s_tile = max(8, (cap // 8) * 8)  # multiple of 8; ragged tail is masked

    grid = pl.cdiv(seq_len, s_tile)

    out = pl.pallas_call(
        _positional_embedding_kernel,
        out_shape=jax.ShapeDtypeStruct((1, seq_len, embed_dim), dtype),
        grid=(grid,),
        in_specs=[pl.BlockSpec((2, embed_dim), lambda i: (0, 0))],
        out_specs=pl.BlockSpec((1, s_tile, embed_dim), lambda i: (0, i, 0)),
        compiler_params=pltpu.CompilerParams(
            dimension_semantics=("parallel",),
            vmem_limit_bytes=48 * 1024 * 1024),
    )(consts)
    return out


class PositionalEmbedding:
    """Pallas-TPU equivalent of the PyTorch PositionalEmbedding module.

    PyTorch builds the table once at __init__ and forward is a free slice;
    here the table is generated on demand and cached per seq_len so repeated
    forwards don't re-pay the kernel cost.
    """

    def __init__(self, embed_dim, max_len=20000, dtype=jnp.float32):
        self.embed_dim = embed_dim
        self.max_len = max_len
        self.dtype = dtype
        self._cache = {}

    def __call__(self, x):
        seq_len = x.shape[1]
        assert seq_len <= self.max_len
        if seq_len not in self._cache:
            self._cache[seq_len] = positional_embedding(
                seq_len, self.embed_dim, dtype=self.dtype)
        return self._cache[seq_len]


def positional_embedding_reference(seq_len, embed_dim):
    # Direct transcription of the PyTorch buffer construction.
    position = jnp.arange(seq_len, dtype=jnp.float32)[:, None]
    div_term = jnp.exp(jnp.arange(0, embed_dim, 2, dtype=jnp.float32)
                       * (-math.log(10000.0) / embed_dim))
    pe = jnp.zeros((seq_len, embed_dim), jnp.float32)
    pe = pe.at[:, 0::2].set(jnp.sin(position * div_term))
    pe = pe.at[:, 1::2].set(jnp.cos(position * div_term))
    return pe[None]


if __name__ == "__main__":
    key = jax.random.PRNGKey(0)

    # Small shapes consistent with the module: x is (batch, seq, hidden).
    batch, seq, hidden = 2, 8, 32
    x = jax.random.normal(key, (batch, seq, hidden), dtype=jnp.float32)

    module = PositionalEmbedding(embed_dim=hidden)
    out = jax.block_until_ready(module(x))
    assert out.shape == (1, seq, hidden)
    ref = positional_embedding_reference(seq, hidden)
    np.testing.assert_allclose(np.asarray(out), np.asarray(ref),
                               rtol=1e-5, atol=1e-5)

    # Cached path returns the same table without rebuilding.
    out_cached = jax.block_until_ready(module(x))
    np.testing.assert_allclose(np.asarray(out_cached), np.asarray(ref),
                               rtol=1e-5, atol=1e-5)

    # Multi-tile grid + ragged (masked) tail block: seq=40 with 16-row tiles
    # -> grid of 3, last block writes only 8 valid rows, no post-kernel slice.
    seq2, hidden2 = 40, 128
    out2 = jax.block_until_ready(
        positional_embedding(seq2, hidden2, max_seq_tile=16))
    assert out2.shape == (1, seq2, hidden2)
    ref2 = positional_embedding_reference(seq2, hidden2)
    np.testing.assert_allclose(np.asarray(out2), np.asarray(ref2),
                               rtol=1e-5, atol=1e-4)

    print("KERNEL_OK")
</pallas_src>

<mosaic_0001>
module attributes {stable_mosaic.version = 11 : i64} {
  func.func @_positional_embedding_kernel(%arg0: i32, %arg1: memref<2x32xf32, #tpu.memory_space<vmem>>, %arg2: memref<1x8x32xf32, #tpu.memory_space<vmem>>) attributes {dimension_semantics = [#tpu.dimension_semantics<parallel>], iteration_bounds = array<i64: 1>, scalar_prefetch = 0 : i64, scratch_operands = 0 : i64, tpu.core_type = #tpu.core_type<tc>, window_params = [{pipeline_mode = #tpu.pipeline_mode<synchronous>, transform_indices = @transform_0, window_bounds = array<i64: 2, 32>}, {transform_indices = @transform_1, window_bounds = array<i64: 1, 8, 32>}]} {
    %c8_i32 = arith.constant 8 : i32
    %0 = arith.muli %arg0, %c8_i32 : i32
    %c0 = arith.constant 0 : index
    %c0_0 = arith.constant 0 : index
    %1 = vector.load %arg1[%c0, %c0_0] : memref<2x32xf32, #tpu.memory_space<vmem>>, vector<2x32xf32>
    %2 = vector.extract_strided_slice %1 {offsets = [0, 0], sizes = [1, 32], strides = [1, 1]} : vector<2x32xf32> to vector<1x32xf32>
    %3 = vector.extract_strided_slice %1 {offsets = [1, 0], sizes = [1, 32], strides = [1, 1]} : vector<2x32xf32> to vector<1x32xf32>
    %4 = tpu.iota {dimensions = array<i32: 0>} : vector<8x32xi32>
    %5 = vector.broadcast %0 : i32 to vector<8x32xi32>
    %6 = arith.addi %4, %5 : vector<8x32xi32>
    %7 = arith.sitofp %6 : vector<8x32xi32> to vector<8x32xf32>
    %8 = vector.broadcast %2 : vector<1x32xf32> to vector<8x32xf32>
    %9 = arith.mulf %7, %8 : vector<8x32xf32>
    %10 = vector.broadcast %3 : vector<1x32xf32> to vector<8x32xf32>
    %11 = arith.addf %9, %10 : vector<8x32xf32>
    %12 = math.sin %11 : vector<8x32xf32>
    %c0_1 = arith.constant 0 : index
    %c0_2 = arith.constant 0 : index
    %c0_3 = arith.constant 0 : index
    %13 = vector.load %arg2[%c0_1, %c0_2, %c0_3] : memref<1x8x32xf32, #tpu.memory_space<vmem>>, vector<1x8x32xf32>
    %14 = vector.shape_cast %13 : vector<1x8x32xf32> to vector<8x32xf32>
    %15 = vector.shape_cast %12 : vector<8x32xf32> to vector<1x8x32xf32>
    tpu.vector_store %arg2[%c0_1, %c0_2, %c0_3], %15 {strides = array<i32>} : memref<1x8x32xf32, #tpu.memory_space<vmem>>, vector<1x8x32xf32>,
    return
  }
  func.func @transform_0(%arg0: i32) -> (i32, i32) {
    %c0_i32 = arith.constant 0 : i32
    %c0_i32_0 = arith.constant 0 : i32
    %c0_i32_1 = arith.constant 0 : i32
    return %c0_i32, %c0_i32_0 : i32, i32
  }
  func.func @transform_1(%arg0: i32) -> (i32, i32, i32) {
    %c0_i32 = arith.constant 0 : i32
    %c0_i32_0 = arith.constant 0 : i32
    %c0_i32_1 = arith.constant 0 : i32
    return %c0_i32, %arg0, %c0_i32_0 : i32, i32, i32
  }
}

</mosaic_0001>

<llo_original>
// kernel: tpu_custom_call.1
$region0: #{tpu_custom_call.1}
  #allocation0 [shape = 'u32[]', space=smem, size = 0x4, offset = 0x4, fixed_abs, tag = 'smem constant byte address 0x4 - core index']
  #allocation1 [shape = 'u32[144,128]{1,0:T(1,128)}', space=vmem, size = 0x12000, scoped, tag = 'internal scratch']
  %s0 = inlined_call_operand.hbm [shape: f32[2,32], index: 0, kind: input, shape index: {}]
  %s1 = inlined_call_operand.hbm [shape: f32[1,8,32], index: 1, kind: output, shape index: {}]
  %s2 = sld [smem:[#allocation0]]
  $region18: #{tpu_custom_call.1} parent=0
    _
  %s4 = ssub.s32 1, %s2
  %s5 = scalar_select 0, %s4, %s2
  $region1: #{tpu_custom_call.1} parent=0
    #allocation2 [shape = 'u8[1024]{0}', space=vmem, size = 0x400, scoped, tag = 'input window, operand 0, single buffered']
    #allocation3 [shape = 's32[1]{0}', space=sflag, size = 0x4, scoped, tag = 'scoped memory for tpu_custom_call.1']
    #allocation4 [shape = 's32[1]{0}', space=sflag, size = 0x4, scoped, tag = 'scoped memory for tpu_custom_call.1']
    #allocation5 [shape = 'u8[4096]{0}', space=vmem, size = 0x1000, scoped, tag = 'output window, operand 0, single buffered']
    %6 = vsyncpa [#allocation3], 0
    %7 = vsyncpa [#allocation4], 0
    // Predicated region
    $region2: #{tpu_custom_call.1} parent=1 // pred_check
      _
    $region3: #{tpu_custom_call.1} parent=1 // pred_check_branch
      %9 = sbr.rel (0) target = $region5
    $region4: #{tpu_custom_call.1} parent=1 // pred_region
      %s11 = ssub.s32 32, 32
      %12 = vsyncadd [#allocation3], %s11
      %s14 = sshll.u32 [#allocation2], 4
      %s15 = int_to_ptr.vmem [resolvable:$true] %s14
      %17 = dma.hbm_to_vmem [thread:$0]  %s0, 32, %s15, [#allocation3]
    $region5: #{tpu_custom_call.1} parent=1 // pred_fallthru
      _
    // Predicated region
    $region6: #{tpu_custom_call.1} parent=1 // pred_check
      _
    $region7: #{tpu_custom_call.1} parent=1 // pred_check_branch
      %19 = sbr.rel (0) target = $region9
    $region8: #{tpu_custom_call.1} parent=1 // pred_region
      %20 = dma.done [#allocation3], 32
    $region9: #{tpu_custom_call.1} parent=1 // pred_fallthru
      _
    %s21 = smul.u32 0, 8
    %v22 = vld [vmem:[#allocation2] sm:$0x3]
    %v23 = vlaneseq
    %v24 = vshrl.u32 %v23, 7
    %v25 = vstv %s21
    %v26 = vadd.s32 %v24, %v25
    %v27 = vcvt.s32.f32 %v26
    %v28 = vlaneseq
    %v29 = vshrl.u32 %v28, 7
    %v30 = vsub.s32 0, %v29
    %v31 = vrot.slane %v22, %v30
    %v32 = vmul.f32 %v27, %v31
    %v33 = vlaneseq
    %v34 = vshrl.u32 %v33, 7
    %v35 = vsub.s32 1, %v34
    %v36 = vrot.slane %v22, %v35
    %v37 = vadd.f32 %v32, %v36
    %v38 = vand.u32 2147483647, %v37
    %vm39 = vcmp.le.f32.partialorder %v38, 0.7853982
    %vm40 = vcmp.lt.s32.totalorder %v37, 0
    %v41 = vand.u32 %v37, 2139095040
    %v42 = vshrl.u32 %v41, 23
    %v43 = vsub.s32 %v42, 127
    %v44 = vand.u32 2147483647, %v37
    %v45 = vand.u32 %v44, 8388607
    %v46 = vor.u32 %v45, 8388608
    %v47 = vsub.s32 0, %v46
    %v48 = vadd.s32 %v43, 1
    %vm49 = vcmp.gt.s32.totalorder %v48, 0
    %v50 = vsel %vm49, %v48, 0
    %v51 = vshrl.u32 %v50, 5
    %v52 = vand.u32 %v50, 31
    %v53 = vsub.s32 32, %v52
    %v54 = vshrl.u32 683565275, %v53
    %v55 = vshll.u32 683565275, %v52
    %v56 = vshrl.u32 2475754826, %v53
    %v57 = vor.u32 %v55, %v56
    %v58 = vshll.u32 2475754826, %v52
    %v59 = vshrl.u32 2131351028, %v53
    %v60 = vor.u32 %v58, %v59
    %v61 = vshll.u32 2131351028, %v52
    %v62 = vshrl.u32 2102212464, %v53
    %v63 = vor.u32 %v61, %v62
    %v64 = vshll.u32 2102212464, %v52
    %v65 = vshrl.u32 920167782, %v53
    %v66 = vor.u32 %v64, %v65
    %v67 = vshll.u32 920167782, %v52
    %v68 = vshrl.u32 1326507024, %v53
    %v69 = vor.u32 %v67, %v68
    %vm70 = vcmp.lt.s32.totalorder %v51, 1
    %vm71 = vcmp.lt.s32.totalorder %v51, 2
    %vm72 = vcmp.lt.s32.totalorder %v51, 3
    %vm73 = vcmp.lt.s32.totalorder %v51, 4
    %v74 = vsel %vm70, %v54, %v57
    %v75 = vsel %vm73, %v63, 2102212464
    %v76 = vsel %vm72, %v60, %v75
    %v77 = vsel %vm71, %v74, %v76
    %v78 = vsel %vm70, %v57, %v60
    %v79 = vsel %vm73, %v66, 920167782
    %v80 = vsel %vm72, %v63, %v79
    %v81 = vsel %vm71, %v78, %v80
    %v82 = vsel %vm70, %v60, %v63
    %v83 = vsel %vm73, %v69, 1326507024
    %v84 = vsel %vm72, %v66, %v83
    %v85 = vsel %vm71, %v82, %v84
    %v86 = vshll.u32 %v46, 8
    %v87 = vmul.u32.u64.compose %v86, %v85
    %v88 = vextract.low.u32 %v87
    %v89 = vextract.high.u32 %v87
    %v90 = vmul.u32.u64.compose %v86, %v81
    %v91 = vextract.low.u32 %v90
    %v92 = vextract.high.u32 %v90
    %v93 = vmul.u32 %v86, %v77
    %v94 = vadd.s32 %v89, %v91
    %vm95 = vc.u32 %v89, %v91
    %v96 = vadd.s32 %v92, 1
    %v97 = vsel %vm95, %v96, %v92
    %v98 = vadd.s32 %v93, %v97
    %v99 = vadd.s32 %v98, 536870912
    %v100 = vshrl.u32 %v99, 30
    %v101 = vshll.u32 %v100, 30
    %v102 = vsub.s32 %v98, %v101
    %vm103 = vcmp.lt.s32.totalorder %v102, 0
    %v104 = vsub.s32 0, %v102
    %v105 = vsel %vm103, %v104, %v102
    %v106 = vclz %v105
    %v107 = vsub.s32 %v106, 2
    %vm108 = vcmp.gt.s32.totalorder 0, %v107
    %v109 = vsel %vm108, 0, %v107
    %v110 = vsub.s32 32, %v109
    %v111 = vshll.u32 %v102, %v109
    %v112 = vshrl.u32 %v94, %v110
    %v113 = vor.u32 %v111, %v112
    %v114 = vsub.s32 4294967266, %v109
    %v115 = vadd.s32 %v114, 127
    %v116 = vshll.u32 %v115, 23
    %v117 = vor.u32 4788187, %v116
    %v118 = vand.u32 2147483647, %v117
    %v120 = vcvt.s32.f32 %v113
    %v121 = vmul.f32 %v120, %v118
    %v122 = vxor.u32 %v121, 2147483648
    %v123 = vsel %vm40, %v122, %v121
    %v124 = vsub.s32 4, %v100
    %v125 = vsel %vm40, %v124, %v100
    %v126 = vsel %vm39, %v37, %v123
    %v127 = vsel %vm39, 0, %v125
    %v128 = vcosq.f32.pop %v126
    %v129 = vsinq.f32.pop %v126
    %vm130 = vweird.f32 %v37
    %v131 = vadd.s32 %v127, 3
    %v132 = vand.u32 %v131, 3
    %vm133 = vcmp.lt.s32.totalorder %v132, 2
    %vm134 = vcmp.eq.s32.totalorder %v132, 0
    %v135 = vxor.u32 %v129, 2147483648
    %v136 = vsel %vm134, %v128, %v135
    %vm137 = vcmp.eq.s32.totalorder %v132, 2
    %v138 = vxor.u32 %v128, 2147483648
    %v139 = vsel %vm137, %v138, %v129
    %v140 = vsel %vm133, %v136, %v139
    %v141 = vsel %vm130, nan, %v140
    %vm142 = vcmask 261120
    %143 = vst.msk [vmem:[#allocation5] sm:$0xff] %vm142, %v141
    // Predicated region
    $region10: #{tpu_custom_call.1} parent=1 // pred_check
      _
    $region11: #{tpu_custom_call.1} parent=1 // pred_check_branch
      %145 = sbr.rel (0) target = $region13
    $region12: #{tpu_custom_call.1} parent=1 // pred_region
      %s147 = ssub.s32 128, 128
      %148 = vsyncadd [#allocation4], %s147
      %s150 = sshll.u32 [#allocation5], 4
      %s151 = int_to_ptr.vmem [resolvable:$true] %s150
      %153 = dma.vmem_to_hbm [thread:$0]  %s151, 128, %s1, [#allocation4]
    $region13: #{tpu_custom_call.1} parent=1 // pred_fallthru
      _
    // Predicated region
    $region14: #{tpu_custom_call.1} parent=1 // pred_check
      _
    $region15: #{tpu_custom_call.1} parent=1 // pred_check_branch
      %155 = sbr.rel (0) target = $region17
    $region16: #{tpu_custom_call.1} parent=1 // pred_region
      %156 = dma.done [#allocation4], 128
    $region17: #{tpu_custom_call.1} parent=1 // pred_fallthru
      _
    %157 = vsyncpa [#allocation3], 1
    %158 = vsyncpa [#allocation4], 1

</llo_original>
